<compile_context>
chip_gen: v7x
topology: tpu7x:2x2x1
jax: 0.10.0
libtpu: 0.0.40
codegen_flags: <defaults>
</compile_context>

<pallas_src>
import functools

import jax
import jax.numpy as jnp
from jax import lax
from jax.experimental import pallas as pl
from jax.experimental.pallas import tpu as pltpu


_LANES = 128
_SUBLANES = 8

in_channels = 192  # mirrors the PyTorch module's default


def _round_up(a, b):
    return (a + b - 1) // b * b


def _num_parallel_cores():
    """TensorCores a 'parallel' grid axis can shard over (megacore chips)."""
    try:
        kind = jax.devices()[0].device_kind.lower()
    except Exception:
        return 1
    if "v7" in kind or "v4" in kind:
        # TODO(synk): verify via trace that dimension_semantics=("parallel",...)
        # actually shards across both TensorCores on v7x; switch to CORE_PARALLEL /
        # pl.core_map if it does not.
        return 2
    return 1


def _vmem_budget_bytes():
    """~75% of physical VMEM (leave headroom for compiler internal scratch)."""
    phys = 64 * 1024 * 1024  # conservative default (v7x-sized)
    try:
        info = pltpu.get_tpu_info()
        phys = int(getattr(info, "vmem_capacity_bytes", phys))
    except Exception:
        pass
    return (phys * 3) // 4


def _pick_chunk(rows, bt):
    """Rows per in-kernel chunk: bt*chunk*128*4 <= ~128 KiB (half the vreg file),
    sublane-aligned when possible, and dividing `rows` so pl.ds slices are full."""
    cap = max(1, 256 // max(bt, 1))
    if rows <= cap:
        return rows
    c = (cap // _SUBLANES) * _SUBLANES
    while c >= _SUBLANES:
        if rows % c == 0:
            return c
        c -= _SUBLANES
    for c in range(cap, 0, -1):
        if rows % c == 0:
            return c
    return 1


# ----------------------------------------------------------------------------
# Single-pass fused kernel: whole (bt, R, L) block resident in VMEM.
# ----------------------------------------------------------------------------
def _scra_fused_kernel(x_ref, w_ref, b_ref, o_ref):
    # x_ref : (bt, R, L) VMEM        o_ref : (bt, R, L) VMEM
    # w_ref : (R, L) or (R, 1) VMEM  (weight/HW, laid out like x / per-row column)
    # b_ref : (1,) SMEM              (conv bias, scalar)
    bt, rows, lanes = x_ref.shape
    chunk = _pick_chunk(rows, bt)
    n_chunks = rows // chunk
    unroll = min(4, n_chunks)

    # Pass 1: fused weighted reduce with a lane-resident accumulator.  The
    # (expensive, XLU) cross-lane reduce happens exactly once, after the loop.
    def _reduce(i, acc):
        start = pl.multiple_of(i * chunk, chunk)
        xc = x_ref[:, pl.ds(start, chunk), :]               # (bt, chunk, L)
        wc = w_ref[pl.ds(start, chunk), :]                  # (chunk, L or 1)
        return acc + jnp.sum(xc * wc[None, :, :], axis=1, keepdims=True)

    acc = lax.fori_loop(0, n_chunks, _reduce,
                        jnp.zeros((bt, 1, lanes), jnp.float32), unroll=unroll)
    total = jnp.sum(acc, axis=2, keepdims=True)             # (bt, 1, 1): one XLU reduce
    s = jax.nn.sigmoid(total + b_ref[0])                    # per-batch gate (EUP)

    # Hoisted broadcast: JAX does not CSE broadcast_in_dim inside the loop.
    s_b = jnp.broadcast_to(s, (bt, chunk, lanes))

    # Pass 2: chunked read -> scale -> lane-dense store.
    def _scale(i, carry):
        start = pl.multiple_of(i * chunk, chunk)
        o_ref[:, pl.ds(start, chunk), :] = x_ref[:, pl.ds(start, chunk), :] * s_b
        return carry

    lax.fori_loop(0, n_chunks, _scale, 0, unroll=unroll)


# ----------------------------------------------------------------------------
# Two-pass streaming fallback (per-batch tensor too large for VMEM).
# ----------------------------------------------------------------------------
def _scra_reduce_kernel(x_ref, w_ref, b_ref, s_ref, *, rows_total, tr):
    # Grid: (batch blocks, R tiles).  s_ref (bt, 1, 128) is a resident accumulator
    # across the R axis; at the last tile it becomes the sigmoid gate.
    r = pl.program_id(1)

    @pl.when(r == 0)
    def _():
        s_ref[...] = jnp.zeros_like(s_ref)

    prod = x_ref[...] * w_ref[...][None, :, :]              # (bt, tr, L)
    if rows_total % tr != 0:
        # Ragged last tile: rows past rows_total hold garbage -> mask them out.
        row_ids = lax.broadcasted_iota(jnp.int32, (1, tr, 1), 1)
        prod = jnp.where(row_ids < (rows_total - r * tr), prod, 0.0)
    s_ref[...] += jnp.sum(prod, axis=(1, 2), keepdims=True)  # broadcast over lanes

    @pl.when(r == pl.num_programs(1) - 1)
    def _():
        s_ref[...] = jax.nn.sigmoid(s_ref[...] + b_ref[0])


def _scra_scale_kernel(s_ref, x_ref, o_ref):
    # s_ref: (bt, 1, 128) all lanes equal; take lane 0 -> (bt, 1, 1) gate.
    o_ref[...] = x_ref[...] * s_ref[:, :, 0:1]


# ----------------------------------------------------------------------------
# Wrapper
# ----------------------------------------------------------------------------
def scra_attention(x_nchw, weight, bias, *, force_two_pass=False,
                   two_pass_row_tile=None):
    """SCRAttention forward.  x_nchw: (B, C, H, W); weight: (C,); bias: ()."""
    B, C, H, W = x_nchw.shape
    HW = H * W
    N = C * HW

    x32 = x_nchw.astype(jnp.float32)
    w32 = weight.reshape(-1).astype(jnp.float32)
    b_sc = jnp.asarray(bias, jnp.float32).reshape(1)

    if N % _LANES == 0:
        # Lane-dense layout (free reshape): full 128-lane vld/vst everywhere.
        R, L = N // _LANES, _LANES
        x_v = x32.reshape(B, R, L)
        w_v = jnp.repeat(w32 / HW, HW).reshape(R, L)
    else:
        # Ragged N: natural (C, HW) layout, no pad/slice HBM round trips.
        R, L = C, HW
        x_v = x32.reshape(B, R, L)
        w_v = (w32 / HW).reshape(R, 1)

    lane_pad = _round_up(L, _LANES)
    w_lane_pad = _round_up(w_v.shape[1], _LANES)
    per_batch_bytes = _round_up(R, _SUBLANES) * lane_pad * 4
    w_bytes = _round_up(R, _SUBLANES) * w_lane_pad * 4
    slack = 2 * 1024 * 1024

    budget = _vmem_budget_bytes()
    n_cores = _num_parallel_cores()

    # bt=1 single-pass needs x + out blocks (double-buffered) + w map (2 bufs).
    need_bt1 = 4 * per_batch_bytes + 2 * w_bytes + slack
    single_pass = (not force_two_pass) and (need_bt1 <= budget)

    if single_pass:
        # ------------------ fused single-pass path ------------------
        target = min(8 * 1024 * 1024,
                     max(per_batch_bytes, (budget - 2 * w_bytes - slack) // 4))
        bt_vreg_cap = max(1, 256 // max(min(R, _SUBLANES), 1))
        bt = max(1, min(B, target // max(per_batch_bytes, 1), bt_vreg_cap))
        if n_cores > 1:
            # keep >= n_cores grid steps for megacore sharding (v4 / v7x only)
            bt = min(bt, pl.cdiv(B, n_cores))
        nb = pl.cdiv(B, bt)  # ragged last batch block: garbage rows are clipped
        vmem_limit = int(min(budget, max(32 * 1024 * 1024,
                                         4 * bt * per_batch_bytes
                                         + 2 * w_bytes + slack)))

        out = pl.pallas_call(
            _scra_fused_kernel,
            out_shape=jax.ShapeDtypeStruct((B, R, L), jnp.float32),
            grid_spec=pltpu.PrefetchScalarGridSpec(
                num_scalar_prefetch=0,
                grid=(nb,),
                in_specs=[
                    pl.BlockSpec((bt, R, L), lambda i: (i, 0, 0)),
                    # NOTE: constant block index -> fetched once, never re-DMA'd.
                    # Left default-buffered for compile safety; it is small
                    # relative to the budget here.
                    pl.BlockSpec((R, w_v.shape[1]), lambda i: (0, 0)),
                    pl.BlockSpec((1,), lambda i: (0,),
                                 memory_space=pltpu.MemorySpace.SMEM),
                ],
                out_specs=pl.BlockSpec((bt, R, L), lambda i: (i, 0, 0)),
            ),
            compiler_params=pltpu.CompilerParams(
                dimension_semantics=("parallel",),
                vmem_limit_bytes=vmem_limit),
        )(x_v, w_v, b_sc)
        return out.reshape(B, C, H, W)

    # ------------------ two-pass streaming fallback ------------------
    bt = 1
    if two_pass_row_tile is not None:
        tr = int(two_pass_row_tile)
    else:
        per_row = lane_pad * 4
        per_row_w = w_lane_pad * 4
        denom = 4 * per_row + 2 * per_row_w
        tr_budget = max(1, (budget - slack) // denom)
        tr_target = max(1, (4 * 1024 * 1024) // per_row)
        tr = max(_SUBLANES, (min(tr_budget, tr_target) // _SUBLANES) * _SUBLANES)
    if R >= _SUBLANES:
        tr = max(_SUBLANES, min(tr, (R // _SUBLANES) * _SUBLANES))
    else:
        tr = R
    nb = pl.cdiv(B, bt)
    nr = pl.cdiv(R, tr)
    x_block_bytes = bt * _round_up(tr, _SUBLANES) * lane_pad * 4
    w_block_bytes = _round_up(tr, _SUBLANES) * w_lane_pad * 4
    vmem_limit = int(min(budget, max(32 * 1024 * 1024,
                                     4 * x_block_bytes + 2 * w_block_bytes + slack)))

    scale = pl.pallas_call(
        functools.partial(_scra_reduce_kernel, rows_total=R, tr=tr),
        out_shape=jax.ShapeDtypeStruct((B, 1, _LANES), jnp.float32),
        grid_spec=pltpu.PrefetchScalarGridSpec(
            num_scalar_prefetch=0,
            grid=(nb, nr),
            in_specs=[
                pl.BlockSpec((bt, tr, L), lambda i, r: (i, r, 0)),
                pl.BlockSpec((tr, w_v.shape[1]), lambda i, r: (r, 0)),
                pl.BlockSpec((1,), lambda i, r: (0,),
                             memory_space=pltpu.MemorySpace.SMEM),
            ],
            out_specs=pl.BlockSpec((bt, 1, _LANES), lambda i, r: (i, 0, 0)),
        ),
        compiler_params=pltpu.CompilerParams(
            dimension_semantics=("parallel", "arbitrary"),
            vmem_limit_bytes=vmem_limit),
    )(x_v, w_v, b_sc)

    out = pl.pallas_call(
        _scra_scale_kernel,
        out_shape=jax.ShapeDtypeStruct((B, R, L), jnp.float32),
        grid_spec=pltpu.PrefetchScalarGridSpec(
            num_scalar_prefetch=0,
            grid=(nb, nr),
            in_specs=[
                pl.BlockSpec((bt, 1, _LANES), lambda i, r: (i, 0, 0)),
                pl.BlockSpec((bt, tr, L), lambda i, r: (i, r, 0)),
            ],
            out_specs=pl.BlockSpec((bt, tr, L), lambda i, r: (i, r, 0)),
        ),
        compiler_params=pltpu.CompilerParams(
            dimension_semantics=("parallel", "parallel"),
            vmem_limit_bytes=vmem_limit),
    )(scale, x_v)
    return out.reshape(B, C, H, W)


# ----------------------------------------------------------------------------
# Reference + tests
# ----------------------------------------------------------------------------
def _reference(x, weight, bias):
    scale = jnp.mean(x, axis=(2, 3), keepdims=True)                 # (B,C,1,1)
    scale = jnp.einsum('bcij,c->bij', scale, weight)[:, None] + bias  # (B,1,1,1)
    scale = jax.nn.sigmoid(scale)
    return x * scale


if __name__ == "__main__":
    key = jax.random.PRNGKey(0)
    cases = [
        # (name, B, C, H, W, kwargs)
        ("aligned_fused", 2, in_channels, 8, 8, {}),
        ("ragged_lanes", 3, 5, 3, 3, {}),
        ("two_pass_fallback", 2, in_channels, 8, 8,
         {"force_two_pass": True, "two_pass_row_tile": 40}),
    ]

    all_ok = True
    for idx, (name, B, C, H, W, kw) in enumerate(cases):
        kx, kwt, kb = jax.random.split(jax.random.fold_in(key, idx), 3)
        x = jax.random.normal(kx, (B, C, H, W), dtype=jnp.float32)
        weight = jax.random.normal(kwt, (C,), dtype=jnp.float32) * 0.05
        bias = jax.random.normal(kb, (), dtype=jnp.float32) * 0.05

        out = jax.block_until_ready(scra_attention(x, weight, bias, **kw))
        ref = _reference(x, weight, bias)
        if not jnp.allclose(out, ref, atol=1e-5, rtol=1e-5):
            all_ok = False
            err = float(jnp.max(jnp.abs(out - ref)))
            print(f"MISMATCH in case '{name}': max abs err {err}")

    if all_ok:
        print("KERNEL_OK")
</pallas_src>

<mosaic_0001>
module attributes {stable_mosaic.version = 11 : i64} {
  func.func @_scra_fused_kernel(%arg0: i32, %arg1: memref<2x96x128xf32, #tpu.memory_space<vmem>>, %arg2: memref<96x128xf32, #tpu.memory_space<vmem>>, %arg3: memref<1xf32, #tpu.memory_space<smem>>, %arg4: memref<2x96x128xf32, #tpu.memory_space<vmem>>) attributes {dimension_semantics = [#tpu.dimension_semantics<parallel>], iteration_bounds = array<i64: 1>, scalar_prefetch = 0 : i64, scratch_operands = 0 : i64, tpu.core_type = #tpu.core_type<tc>, window_params = [{transform_indices = @transform_0, window_bounds = array<i64: 2, 96, 128>}, {pipeline_mode = #tpu.pipeline_mode<synchronous>, transform_indices = @transform_1, window_bounds = array<i64: 96, 128>}, {transform_indices = @transform_2, window_bounds = array<i64: 1>}, {transform_indices = @transform_3, window_bounds = array<i64: 2, 96, 128>}]} {
    %cst = arith.constant 0.000000e+00 : f32
    %0 = vector.broadcast %cst : f32 to vector<2x1x128xf32>
    %c0_i32 = arith.constant 0 : i32
    %c96_i32 = arith.constant 96 : i32
    %1 = arith.muli %c0_i32, %c96_i32 : i32
    %2 = tpu.assume_multiple %1, 96 : i32
    %c0 = arith.constant 0 : index
    %3 = arith.index_cast %2 : i32 to index
    %c0_0 = arith.constant 0 : index
    %4 = vector.load %arg1[%c0, %3, %c0_0] : memref<2x96x128xf32, #tpu.memory_space<vmem>>, vector<2x96x128xf32>
    %5 = arith.index_cast %2 : i32 to index
    %c0_1 = arith.constant 0 : index
    %6 = vector.load %arg2[%5, %c0_1] : memref<96x128xf32, #tpu.memory_space<vmem>>, vector<96x128xf32>
    %7 = vector.shape_cast %6 : vector<96x128xf32> to vector<1x96x128xf32>
    %8 = vector.broadcast %7 : vector<1x96x128xf32> to vector<2x96x128xf32>
    %9 = arith.mulf %4, %8 : vector<2x96x128xf32>
    %cst_2 = arith.constant dense<0.000000e+00> : vector<2x128xf32>
    %10 = vector.multi_reduction <add>, %9, %cst_2 [1] : vector<2x96x128xf32> to vector<2x128xf32>
    %11 = vector.shape_cast %10 : vector<2x128xf32> to vector<2x1x128xf32>
    %12 = arith.addf %0, %11 : vector<2x1x128xf32>
    %c1_i32 = arith.constant 1 : i32
    %cst_3 = arith.constant dense<0.000000e+00> : vector<2x1xf32>
    %13 = vector.multi_reduction <add>, %12, %cst_3 [2] : vector<2x1x128xf32> to vector<2x1xf32>
    %14 = vector.shape_cast %13 : vector<2x1xf32> to vector<2x1x1xf32>
    %c0_4 = arith.constant 0 : index
    %15 = memref.load %arg3[%c0_4] : memref<1xf32, #tpu.memory_space<smem>>
    %16 = vector.broadcast %15 : f32 to vector<2x1x1xf32>
    %17 = arith.addf %14, %16 : vector<2x1x1xf32>
    %18 = arith.negf %17 : vector<2x1x1xf32>
    %19 = math.exp %18 : vector<2x1x1xf32>
    %cst_5 = arith.constant 1.000000e+00 : f32
    %20 = vector.broadcast %cst_5 : f32 to vector<2x1x1xf32>
    %21 = arith.addf %20, %19 : vector<2x1x1xf32>
    %22 = arith.divf %20, %21 : vector<2x1x1xf32>
    %23 = vector.shape_cast %22 : vector<2x1x1xf32> to vector<2x1x1xf32>
    %24 = vector.broadcast %23 : vector<2x1x1xf32> to vector<2x96x128xf32>
    %c0_i32_6 = arith.constant 0 : i32
    %c96_i32_7 = arith.constant 96 : i32
    %25 = arith.muli %c0_i32_6, %c96_i32_7 : i32
    %26 = tpu.assume_multiple %25, 96 : i32
    %c0_8 = arith.constant 0 : index
    %27 = arith.index_cast %26 : i32 to index
    %c0_9 = arith.constant 0 : index
    %28 = vector.load %arg1[%c0_8, %27, %c0_9] : memref<2x96x128xf32, #tpu.memory_space<vmem>>, vector<2x96x128xf32>
    %29 = arith.mulf %28, %24 : vector<2x96x128xf32>
    %c0_10 = arith.constant 0 : index
    %30 = arith.index_cast %26 : i32 to index
    %c0_11 = arith.constant 0 : index
    %31 = vector.load %arg4[%c0_10, %30, %c0_11] : memref<2x96x128xf32, #tpu.memory_space<vmem>>, vector<2x96x128xf32>
    tpu.vector_store %arg4[%c0_10, %30, %c0_11], %29 {strides = array<i32>} : memref<2x96x128xf32, #tpu.memory_space<vmem>>, vector<2x96x128xf32>,
    %c1_i32_12 = arith.constant 1 : i32
    return
  }
  func.func @transform_0(%arg0: i32) -> (i32, i32, i32) {
    %c0_i32 = arith.constant 0 : i32
    %c0_i32_0 = arith.constant 0 : i32
    %c0_i32_1 = arith.constant 0 : i32
    return %arg0, %c0_i32, %c0_i32_0 : i32, i32, i32
  }
  func.func @transform_1(%arg0: i32) -> (i32, i32) {
    %c0_i32 = arith.constant 0 : i32
    %c0_i32_0 = arith.constant 0 : i32
    %c0_i32_1 = arith.constant 0 : i32
    return %c0_i32, %c0_i32_0 : i32, i32
  }
  func.func @transform_2(%arg0: i32) -> i32 {
    %c0_i32 = arith.constant 0 : i32
    %c0_i32_0 = arith.constant 0 : i32
    return %c0_i32 : i32
  }
  func.func @transform_3(%arg0: i32) -> (i32, i32, i32) {
    %c0_i32 = arith.constant 0 : i32
    %c0_i32_0 = arith.constant 0 : i32
    %c0_i32_1 = arith.constant 0 : i32
    return %arg0, %c0_i32, %c0_i32_0 : i32, i32, i32
  }
}

</mosaic_0001>

<llo_original>
// kernel: tpu_custom_call.1
$region0: #{tpu_custom_call.1}
  #allocation0 [shape = 'u32[]', space=smem, size = 0x4, offset = 0x4, fixed_abs, tag = 'smem constant byte address 0x4 - core index']
  #allocation1 [shape = 'u32[144,128]{1,0:T(1,128)}', space=vmem, size = 0x12000, scoped, tag = 'internal scratch']
  #allocation2 [shape = 'f32[1]{0:T(128)S(6)}', space=smem, size = 0x200, scoped, tag = 'scoped memory for tpu_custom_call.1']
  %s0 = inlined_call_operand.hbm [shape: f32[2,96,128], index: 0, kind: input, shape index: {}]
  %s1 = inlined_call_operand.hbm [shape: f32[96,128], index: 1, kind: input, shape index: {}]
  %s2 = inlined_call_operand.<no memory space> [shape: f32[1], index: 2, kind: input, shape index: {}]
  %s3 = inlined_call_operand.hbm [shape: f32[2,96,128], index: 3, kind: output, shape index: {}]
  %s4 = sld [smem:[#allocation0]]
  $region30: #{tpu_custom_call.1} parent=0
    _
  %s6 = ssub.s32 1, %s4
  %s7 = scalar_select 0, %s6, %s4
  %8 = sst [smem:[#allocation2]] %s2
  $region1: #{tpu_custom_call.1} parent=0
    #allocation3 [shape = 'u8[98304]{0}', space=vmem, size = 0x18000, scoped, tag = 'input window, operand 0, single buffered']
    #allocation4 [shape = 's32[1]{0}', space=sflag, size = 0x4, scoped, tag = 'scoped memory for tpu_custom_call.1']
    #allocation5 [shape = 's32[1]{0}', space=sflag, size = 0x4, scoped, tag = 'scoped memory for tpu_custom_call.1']
    #allocation6 [shape = 'u8[49152]{0}', space=vmem, size = 0xc000, scoped, tag = 'input window, operand 1, single buffered']
    #allocation7 [shape = 's32[1]{0}', space=sflag, size = 0x4, scoped, tag = 'scoped memory for tpu_custom_call.1']
    #allocation8 [shape = 'u8[98304]{0}', space=vmem, size = 0x18000, scoped, tag = 'output window, operand 0, single buffered']
    %9 = vsyncpa [#allocation4], 0
    %10 = vsyncpa [#allocation7], 0
    %11 = vsyncpa [#allocation5], 0
    // Predicated region
    $region2: #{tpu_custom_call.1} parent=1 // pred_check
      _
    $region3: #{tpu_custom_call.1} parent=1 // pred_check_branch
      %13 = sbr.rel (0) target = $region5
    $region4: #{tpu_custom_call.1} parent=1 // pred_region
      %s15 = ssub.s32 3072, 3072
      %16 = vsyncadd [#allocation4], %s15
      %s17 = sshll.u32 [#allocation3], 4
      %s18 = int_to_ptr.vmem [resolvable:$true] %s17
      %23 = dma.hbm_to_vmem [thread:$0]  %s0, 3072, %s18, [#allocation4], 128, 128, 8
    $region5: #{tpu_custom_call.1} parent=1 // pred_fallthru
      _
    // Predicated region
    $region6: #{tpu_custom_call.1} parent=1 // pred_check
      _
    $region7: #{tpu_custom_call.1} parent=1 // pred_check_branch
      %25 = sbr.rel (0) target = $region9
    $region8: #{tpu_custom_call.1} parent=1 // pred_region
      %s27 = ssub.s32 1536, 1536
      %28 = vsyncadd [#allocation7], %s27
      %s29 = sshll.u32 [#allocation6], 4
      %s30 = int_to_ptr.vmem [resolvable:$true] %s29
      %35 = dma.hbm_to_vmem [thread:$0]  %s1, 1536, %s30, [#allocation7], 128, 128, 8
    $region9: #{tpu_custom_call.1} parent=1 // pred_fallthru
      _
    // Predicated region
    $region10: #{tpu_custom_call.1} parent=1 // pred_check
      _
    $region11: #{tpu_custom_call.1} parent=1 // pred_check_branch
      %37 = sbr.rel (0) target = $region13
    $region12: #{tpu_custom_call.1} parent=1 // pred_region
      _
    $region13: #{tpu_custom_call.1} parent=1 // pred_fallthru
      _
    // Predicated region
    $region14: #{tpu_custom_call.1} parent=1 // pred_check
      _
    $region15: #{tpu_custom_call.1} parent=1 // pred_check_branch
      %39 = sbr.rel (0) target = $region17
    $region16: #{tpu_custom_call.1} parent=1 // pred_region
      %40 = dma.done [#allocation4], 3072
    $region17: #{tpu_custom_call.1} parent=1 // pred_fallthru
      _
    // Predicated region
    $region18: #{tpu_custom_call.1} parent=1 // pred_check
      _
    $region19: #{tpu_custom_call.1} parent=1 // pred_check_branch
      %42 = sbr.rel (0) target = $region21
    $region20: #{tpu_custom_call.1} parent=1 // pred_region
      %43 = dma.done [#allocation7], 1536
    $region21: #{tpu_custom_call.1} parent=1 // pred_fallthru
      _
    %v44 = vld [vmem:[#allocation3] sm:$0xff]
    %v45 = vld [vmem:[#allocation3 + $0x8] sm:$0xff]
    %v46 = vld [vmem:[#allocation3 + $0x10] sm:$0xff]
    %v47 = vld [vmem:[#allocation3 + $0x18] sm:$0xff]
    %v48 = vld [vmem:[#allocation3 + $0x20] sm:$0xff]
    %v49 = vld [vmem:[#allocation3 + $0x28] sm:$0xff]
    %v50 = vld [vmem:[#allocation3 + $0x30] sm:$0xff]
    %v51 = vld [vmem:[#allocation3 + $0x38] sm:$0xff]
    %v52 = vld [vmem:[#allocation3 + $0x40] sm:$0xff]
    %v53 = vld [vmem:[#allocation3 + $0x48] sm:$0xff]
    %v54 = vld [vmem:[#allocation3 + $0x50] sm:$0xff]
    %v55 = vld [vmem:[#allocation3 + $0x58] sm:$0xff]
    %v56 = vld [vmem:[#allocation3 + $0x60] sm:$0xff]
    %v57 = vld [vmem:[#allocation3 + $0x68] sm:$0xff]
    %v58 = vld [vmem:[#allocation3 + $0x70] sm:$0xff]
    %v59 = vld [vmem:[#allocation3 + $0x78] sm:$0xff]
    %v60 = vld [vmem:[#allocation3 + $0x80] sm:$0xff]
    %v61 = vld [vmem:[#allocation3 + $0x88] sm:$0xff]
    %v62 = vld [vmem:[#allocation3 + $0x90] sm:$0xff]
    %v63 = vld [vmem:[#allocation3 + $0x98] sm:$0xff]
    %v64 = vld [vmem:[#allocation3 + $0xa0] sm:$0xff]
    %v65 = vld [vmem:[#allocation3 + $0xa8] sm:$0xff]
    %v66 = vld [vmem:[#allocation3 + $0xb0] sm:$0xff]
    %v67 = vld [vmem:[#allocation3 + $0xb8] sm:$0xff]
    %v68 = vld [vmem:[#allocation6] sm:$0xff]
    %v69 = vld [vmem:[#allocation6 + $0x8] sm:$0xff]
    %v70 = vld [vmem:[#allocation6 + $0x10] sm:$0xff]
    %v71 = vld [vmem:[#allocation6 + $0x18] sm:$0xff]
    %v72 = vld [vmem:[#allocation6 + $0x20] sm:$0xff]
    %v73 = vld [vmem:[#allocation6 + $0x28] sm:$0xff]
    %v74 = vld [vmem:[#allocation6 + $0x30] sm:$0xff]
    %v75 = vld [vmem:[#allocation6 + $0x38] sm:$0xff]
    %v76 = vld [vmem:[#allocation6 + $0x40] sm:$0xff]
    %v77 = vld [vmem:[#allocation6 + $0x48] sm:$0xff]
    %v78 = vld [vmem:[#allocation6 + $0x50] sm:$0xff]
    %v79 = vld [vmem:[#allocation6 + $0x58] sm:$0xff]
    %v80 = vmul.f32 %v44, %v68
    %v81 = vmul.f32 %v45, %v69
    %v82 = vmul.f32 %v46, %v70
    %v83 = vmul.f32 %v47, %v71
    %v84 = vmul.f32 %v48, %v72
    %v85 = vmul.f32 %v49, %v73
    %v86 = vmul.f32 %v50, %v74
    %v87 = vmul.f32 %v51, %v75
    %v88 = vmul.f32 %v52, %v76
    %v89 = vmul.f32 %v53, %v77
    %v90 = vmul.f32 %v54, %v78
    %v91 = vmul.f32 %v55, %v79
    %v92 = vmul.f32 %v56, %v68
    %v93 = vmul.f32 %v57, %v69
    %v94 = vmul.f32 %v58, %v70
    %v95 = vmul.f32 %v59, %v71
    %v96 = vmul.f32 %v60, %v72
    %v97 = vmul.f32 %v61, %v73
    %v98 = vmul.f32 %v62, %v74
    %v99 = vmul.f32 %v63, %v75
    %v100 = vmul.f32 %v64, %v76
    %v101 = vmul.f32 %v65, %v77
    %v102 = vmul.f32 %v66, %v78
    %v103 = vmul.f32 %v67, %v79
    %v104 = vadd.f32 %v80, %v81
    %v105 = vadd.f32 %v104, %v82
    %v106 = vadd.f32 %v105, %v83
    %v107 = vadd.f32 %v106, %v84
    %v108 = vadd.f32 %v107, %v85
    %v109 = vadd.f32 %v108, %v86
    %v110 = vadd.f32 %v109, %v87
    %v111 = vadd.f32 %v110, %v88
    %v112 = vadd.f32 %v111, %v89
    %v113 = vadd.f32 %v112, %v90
    %v114 = vadd.f32 %v113, %v91
    %v115 = vrot.slane %v114, 4
    %v116 = vadd.f32 %v114, %v115
    %v117 = vrot.slane %v116, 2
    %v118 = vadd.f32 %v116, %v117
    %v119 = vrot.slane %v118, 1
    %v120 = vadd.f32 %v118, %v119
    %v121 = vadd.f32 %v92, %v93
    %v122 = vadd.f32 %v121, %v94
    %v123 = vadd.f32 %v122, %v95
    %v124 = vadd.f32 %v123, %v96
    %v125 = vadd.f32 %v124, %v97
    %v126 = vadd.f32 %v125, %v98
    %v127 = vadd.f32 %v126, %v99
    %v128 = vadd.f32 %v127, %v100
    %v129 = vadd.f32 %v128, %v101
    %v130 = vadd.f32 %v129, %v102
    %v131 = vadd.f32 %v130, %v103
    %v132 = vrot.slane %v131, 4
    %v133 = vadd.f32 %v131, %v132
    %v134 = vrot.slane %v133, 2
    %v135 = vadd.f32 %v133, %v134
    %v136 = vrot.slane %v135, 1
    %v137 = vadd.f32 %v135, %v136
    %v138 = vadd.f32 %v120, 0.0
    %v139 = vadd.f32 %v137, 0.0
    %140 = vadd.xlane.f32.xlu0 %v138
    %v141 = vpop.xlane.xlu0 %140
    %142 = vadd.xlane.f32.xlu0 %v139
    %v143 = vpop.xlane.xlu0 %142
    %s144 = sld [smem:[#allocation2]]
    %v145 = vstv %s144
    %v146 = vadd.f32 %v141, %v145
    %v147 = vadd.f32 %v143, %v145
    %v148 = vxor.u32 %v146, 2147483648
    %v149 = vxor.u32 %v147, 2147483648
    %v150 = vmul.f32 %v148, 1.442695
    %v151 = vpow.pop %v150
    %v152 = vmul.f32 %v149, 1.442695
    %v153 = vpow.pop %v152
    %v154 = vadd.f32 %v151, 1.0
    %v155 = vadd.f32 %v153, 1.0
    %v156 = vrcp.pop %v154
    %v157 = vmul.f32 1.0, %v156
    %v158 = vrcp.pop %v155
    %v159 = vmul.f32 1.0, %v158
    %v160 = vmul.f32 %v44, %v157
    %v161 = vmul.f32 %v45, %v157
    %v162 = vmul.f32 %v46, %v157
    %v163 = vmul.f32 %v47, %v157
    %v164 = vmul.f32 %v48, %v157
    %v165 = vmul.f32 %v49, %v157
    %v166 = vmul.f32 %v50, %v157
    %v167 = vmul.f32 %v51, %v157
    %v168 = vmul.f32 %v52, %v157
    %v169 = vmul.f32 %v53, %v157
    %v170 = vmul.f32 %v54, %v157
    %v171 = vmul.f32 %v55, %v157
    %v172 = vmul.f32 %v56, %v159
    %v173 = vmul.f32 %v57, %v159
    %v174 = vmul.f32 %v58, %v159
    %v175 = vmul.f32 %v59, %v159
    %v176 = vmul.f32 %v60, %v159
    %v177 = vmul.f32 %v61, %v159
    %v178 = vmul.f32 %v62, %v159
    %v179 = vmul.f32 %v63, %v159
    %v180 = vmul.f32 %v64, %v159
    %v181 = vmul.f32 %v65, %v159
    %v182 = vmul.f32 %v66, %v159
    %v183 = vmul.f32 %v67, %v159
    %184 = vst [vmem:[#allocation8] sm:$0xff] %v160
    %185 = vst [vmem:[#allocation8 + $0x8] sm:$0xff] %v161
    %186 = vst [vmem:[#allocation8 + $0x10] sm:$0xff] %v162
    %187 = vst [vmem:[#allocation8 + $0x18] sm:$0xff] %v163
    %188 = vst [vmem:[#allocation8 + $0x20] sm:$0xff] %v164
    %189 = vst [vmem:[#allocation8 + $0x28] sm:$0xff] %v165
    %190 = vst [vmem:[#allocation8 + $0x30] sm:$0xff] %v166
    %191 = vst [vmem:[#allocation8 + $0x38] sm:$0xff] %v167
    %192 = vst [vmem:[#allocation8 + $0x40] sm:$0xff] %v168
    %193 = vst [vmem:[#allocation8 + $0x48] sm:$0xff] %v169
    %194 = vst [vmem:[#allocation8 + $0x50] sm:$0xff] %v170
    %195 = vst [vmem:[#allocation8 + $0x58] sm:$0xff] %v171
    %196 = vst [vmem:[#allocation8 + $0x60] sm:$0xff] %v172
    %197 = vst [vmem:[#allocation8 + $0x68] sm:$0xff] %v173
    %198 = vst [vmem:[#allocation8 + $0x70] sm:$0xff] %v174
    %199 = vst [vmem:[#allocation8 + $0x78] sm:$0xff] %v175
    %200 = vst [vmem:[#allocation8 + $0x80] sm:$0xff] %v176
    %201 = vst [vmem:[#allocation8 + $0x88] sm:$0xff] %v177
    %202 = vst [vmem:[#allocation8 + $0x90] sm:$0xff] %v178
    %203 = vst [vmem:[#allocation8 + $0x98] sm:$0xff] %v179
    %204 = vst [vmem:[#allocation8 + $0xa0] sm:$0xff] %v180
    %205 = vst [vmem:[#allocation8 + $0xa8] sm:$0xff] %v181
    %206 = vst [vmem:[#allocation8 + $0xb0] sm:$0xff] %v182
    %207 = vst [vmem:[#allocation8 + $0xb8] sm:$0xff] %v183
    // Predicated region
    $region22: #{tpu_custom_call.1} parent=1 // pred_check
      _
    $region23: #{tpu_custom_call.1} parent=1 // pred_check_branch
      %209 = sbr.rel (0) target = $region25
    $region24: #{tpu_custom_call.1} parent=1 // pred_region
      %s211 = ssub.s32 3072, 3072
      %212 = vsyncadd [#allocation5], %s211
      %s213 = sshll.u32 [#allocation8], 4
      %s214 = int_to_ptr.vmem [resolvable:$true] %s213
      %219 = dma.vmem_to_hbm [thread:$0]  %s214, 3072, %s3, [#allocation5], 128, 128, 8
    $region25: #{tpu_custom_call.1} parent=1 // pred_fallthru
      _
    // Predicated region
    $region26: #{tpu_custom_call.1} parent=1 // pred_check
      _
    $region27: #{tpu_custom_call.1} parent=1 // pred_check_branch
      %221 = sbr.rel (0) target = $region29
    $region28: #{tpu_custom_call.1} parent=1 // pred_region
      %222 = dma.done [#allocation5], 3072
    $region29: #{tpu_custom_call.1} parent=1 // pred_fallthru
      _
    %223 = vsyncpa [#allocation4], 1
    %224 = vsyncpa [#allocation7], 1
    %225 = vsyncpa [#allocation5], 1

</llo_original>
